<compile_context>
chip_gen: v7x
topology: tpu7x:2x2x1
jax: 0.10.0
libtpu: 0.0.40
codegen_flags: <defaults>
</compile_context>

<pallas_src>
import jax
import jax.numpy as jnp
from jax import lax
from jax.experimental import pallas as pl
from jax.experimental.pallas import tpu as pltpu


def siamese_kernel(tx_ref, tm_ref, sx_ref, sm_ref, w_ref, b_ref, out_ref):
    # tx_ref: (TN, S, Hin) bf16  text-line token embeddings (this tile)
    # tm_ref: (TN, S)      f32   text attention masks (1.0 = token, 0.0 = pad)
    # sx_ref: (1, S, Hin)  bf16  summary token embeddings (resident block)
    # sm_ref: (1, S)       f32   summary attention mask   (resident block)
    # w_ref:  (Hin, H)     bf16  synthetic encoder projection (resident)
    # b_ref:  (1, H)       f32   bias (resident)
    # out_ref:(1, TN)      f32   cosine similarities for this tile of lines
    TN, S, Hin = tx_ref.shape
    H = w_ref.shape[1]
    w = w_ref[...]                                                  # bf16

    # ---- synthetic encoder for the text lines: one flattened MXU matmul ----
    xt = tx_ref[...].reshape(TN * S, Hin)                           # bf16
    tok_t = jnp.dot(xt, w, preferred_element_type=jnp.float32)      # (TN*S, H)
    tok_t = jnp.tanh(tok_t + b_ref[...])                            # f32

    # ---- masked mean pooling (mean_pooling) on the VPU (no M=1 matmuls) ----
    tok_t3 = tok_t.reshape(TN, S, H)                                # (TN, S, H)
    m_t = tm_ref[...].reshape(TN, S, 1)                             # (TN, S, 1)
    sum_t = jnp.sum(tok_t3 * m_t, axis=1)                           # (TN, H)
    cnt_t = jnp.maximum(jnp.sum(tm_ref[...], axis=1, keepdims=True),
                        jnp.float32(1e-9))                          # (TN, 1)
    # approx reciprocal (EUP) is exact enough: the per-sentence scale cancels
    # in the cosine ratio below.
    pooled_t = sum_t * pl.reciprocal(cnt_t, approx=True)            # (TN, H)

    # ---- summary encoding (tiny: S rows; recomputed per tile so the grid
    #      axis stays embarrassingly parallel across TensorCores) ----
    xs = sx_ref[...].reshape(S, Hin)                                 # bf16
    tok_s = jnp.dot(xs, w, preferred_element_type=jnp.float32)       # (S, H)
    tok_s = jnp.tanh(tok_s + b_ref[...])                             # f32
    m_s = sm_ref[...].reshape(S, 1)                                  # (S, 1)
    sum_s = jnp.sum(tok_s * m_s, axis=0, keepdims=True)              # (1, H)
    cnt_s = jnp.maximum(jnp.sum(sm_ref[...], axis=-1, keepdims=True),
                        jnp.float32(1e-9))                           # (1, 1)
    pooled_s = sum_s * pl.reciprocal(cnt_s, approx=True)             # (1, H)

    # ---- cosine similarity: summary vs. every text line (torch semantics) ----
    dots = lax.dot_general(pooled_s, pooled_t, (((1,), (1,)), ((), ())),
                           preferred_element_type=jnp.float32)       # (1, TN)
    t_nsq = lax.dot_general(jnp.ones((1, H), jnp.float32),
                            pooled_t * pooled_t,
                            (((1,), (1,)), ((), ())),
                            preferred_element_type=jnp.float32)      # (1, TN)
    s_nsq = jnp.sum(pooled_s * pooled_s, axis=-1, keepdims=True)     # (1, 1)
    # torch.cosine_similarity: dot / max(||s|| * ||t||, eps), eps = 1e-8
    inv_denom = jnp.minimum(lax.rsqrt(t_nsq * s_nsq), jnp.float32(1e8))
    out_ref[...] = dots * inv_denom


def siamese_pallas(text_x, text_mask, summary_x, summary_mask, w, b,
                   *, tile_lines=None):
    N, S, Hin = text_x.shape
    H = w.shape[1]

    # Pre-cast activations/weights to bf16 in the wrapper: halves HBM->VMEM
    # DMA bytes and removes per-step in-kernel casts. Masks/bias stay f32.
    text_x = text_x.astype(jnp.bfloat16)
    summary_x = summary_x.astype(jnp.bfloat16)
    w = w.astype(jnp.bfloat16)
    b = b.astype(jnp.float32).reshape(1, H)
    text_mask = text_mask.astype(jnp.float32)
    summary_mask = summary_mask.astype(jnp.float32).reshape(1, S)

    # Tile the text-line axis. Small N -> single full tile (block == full
    # array, satisfies the (8,128) rule); large N -> 128 lines per tile so the
    # per-tile output chunk is lane-dense and the tile is a sublane multiple.
    if tile_lines is None:
        tile_lines = N if N <= 128 else 128
    TN = int(tile_lines)
    num_tiles = pl.cdiv(N, TN)
    N_pad = num_tiles * TN
    if N_pad != N:
        # Padded lines get an all-zero mask -> pooled embedding 0 -> cosine 0;
        # they are sliced off below.
        text_x = jnp.pad(text_x, ((0, N_pad - N), (0, 0), (0, 0)))
        text_mask = jnp.pad(text_mask, ((0, N_pad - N), (0, 0)))

    out = pl.pallas_call(
        siamese_kernel,
        out_shape=jax.ShapeDtypeStruct((1, N_pad), jnp.float32),
        grid=(num_tiles,),
        in_specs=[
            pl.BlockSpec((TN, S, Hin), lambda i: (i, 0, 0)),   # text tile
            pl.BlockSpec((TN, S), lambda i: (i, 0)),           # text mask tile
            pl.BlockSpec((1, S, Hin), lambda i: (0, 0, 0)),    # summary (resident)
            pl.BlockSpec((1, S), lambda i: (0, 0)),            # summary mask
            pl.BlockSpec((Hin, H), lambda i: (0, 0)),          # weights (resident)
            pl.BlockSpec((1, H), lambda i: (0, 0)),            # bias (resident)
        ],
        out_specs=pl.BlockSpec((1, TN), lambda i: (0, i)),
        compiler_params=pltpu.CompilerParams(
            # distinct output chunk per tile -> safe to shard across TCs (v7x)
            dimension_semantics=("parallel",),
            # explicit scoped-VMEM budget; fits v7x's 64 MiB physical VMEM
            vmem_limit_bytes=32 * 1024 * 1024,
        ),
    )(text_x, text_mask, summary_x, summary_mask, w, b)
    return out[0, :N]                 # (N,) == torch.stack(similarities)


siamese_forward = jax.jit(siamese_pallas)


def siamese_ref(text_x, text_mask, summary_x, summary_mask, w, b):
    """Pure-JAX f32 reference reproducing the PyTorch module's math."""
    def encode(x):
        return jnp.tanh(jnp.einsum('bsi,ih->bsh', x, w) + b[None, :, :])

    def pool(tok, mask):
        s = jnp.sum(tok * mask[..., None], axis=1)
        c = jnp.clip(jnp.sum(mask, axis=1, keepdims=True), 1e-9, None)
        return s / c

    t = pool(encode(text_x), text_mask)                    # (N, H)
    s = pool(encode(summary_x), summary_mask)              # (1, H)
    num = jnp.sum(s * t, axis=-1)                          # (N,)
    den = jnp.maximum(jnp.linalg.norm(s, axis=-1) * jnp.linalg.norm(t, axis=-1),
                      1e-8)
    return num / den


if __name__ == "__main__":
    key = jax.random.PRNGKey(0)
    k_text, k_sum, k_w, k_b = jax.random.split(key, 4)

    # Small, deterministic synthetic shapes (NOT for perf tuning; benchmark at
    # real MiniLM shapes S~256, Hin=H=384 -- see TODOs above).
    N_TEXT = 4      # number of text lines
    S = 8           # padded sequence length (max_length stand-in)
    H_IN = 64       # synthetic token input-embedding dim
    H = 128         # encoder hidden size (stand-in for 384)

    # Synthetic token embeddings (stand-in for tokenizer + embedding lookup)
    text_x = jax.random.normal(k_text, (N_TEXT, S, H_IN), dtype=jnp.float32)
    summary_x = jax.random.normal(k_sum, (1, S, H_IN), dtype=jnp.float32)

    # Attention masks with varying valid lengths (rest is padding)
    text_lens = jnp.array([8, 5, 3, 6], dtype=jnp.int32)
    pos = jnp.arange(S, dtype=jnp.int32)
    text_mask = (pos[None, :] < text_lens[:, None]).astype(jnp.float32)
    summary_mask = (pos[None, :] < 7).astype(jnp.float32)

    # Deterministic synthetic encoder parameters
    w = (jax.random.normal(k_w, (H_IN, H), dtype=jnp.float32)
         / jnp.sqrt(jnp.float32(H_IN)))
    b = 0.01 * jax.random.normal(k_b, (1, H), dtype=jnp.float32)

    sims = siamese_forward(text_x, text_mask, summary_x, summary_mask, w, b)
    sims = jax.block_until_ready(sims)

    ref = siamese_ref(text_x, text_mask, summary_x, summary_mask, w, b)

    assert sims.shape == (N_TEXT,)
    assert bool(jnp.all(jnp.isfinite(sims)))
    # bf16 MXU operands + approx reciprocal -> tolerance-based comparison.
    assert bool(jnp.allclose(sims, ref, atol=3e-2, rtol=3e-2)), (sims, ref)
    print("KERNEL_OK")
</pallas_src>

<mosaic_0001>
module attributes {stable_mosaic.version = 11 : i64} {
  func.func @siamese_kernel(%arg0: i32, %arg1: memref<4x8x64xbf16, #tpu.memory_space<vmem>>, %arg2: memref<4x8xf32, #tpu.memory_space<vmem>>, %arg3: memref<1x8x64xbf16, #tpu.memory_space<vmem>>, %arg4: memref<1x8xf32, #tpu.memory_space<vmem>>, %arg5: memref<64x128xbf16, #tpu.memory_space<vmem>>, %arg6: memref<1x128xf32, #tpu.memory_space<vmem>>, %arg7: memref<1x4xf32, #tpu.memory_space<vmem>>) attributes {dimension_semantics = [#tpu.dimension_semantics<parallel>], iteration_bounds = array<i64: 1>, scalar_prefetch = 0 : i64, scratch_operands = 0 : i64, tpu.core_type = #tpu.core_type<tc>, window_params = [{transform_indices = @transform_0, window_bounds = array<i64: 4, 8, 64>}, {transform_indices = @transform_1, window_bounds = array<i64: 4, 8>}, {pipeline_mode = #tpu.pipeline_mode<synchronous>, transform_indices = @transform_2, window_bounds = array<i64: 1, 8, 64>}, {pipeline_mode = #tpu.pipeline_mode<synchronous>, transform_indices = @transform_3, window_bounds = array<i64: 1, 8>}, {pipeline_mode = #tpu.pipeline_mode<synchronous>, transform_indices = @transform_4, window_bounds = array<i64: 64, 128>}, {pipeline_mode = #tpu.pipeline_mode<synchronous>, transform_indices = @transform_5, window_bounds = array<i64: 1, 128>}, {transform_indices = @transform_6, window_bounds = array<i64: 1, 4>}]} {
    %c0 = arith.constant 0 : index
    %c0_0 = arith.constant 0 : index
    %0 = vector.load %arg5[%c0, %c0_0] : memref<64x128xbf16, #tpu.memory_space<vmem>>, vector<64x128xbf16>
    %c0_1 = arith.constant 0 : index
    %c0_2 = arith.constant 0 : index
    %c0_3 = arith.constant 0 : index
    %1 = vector.load %arg1[%c0_1, %c0_2, %c0_3] : memref<4x8x64xbf16, #tpu.memory_space<vmem>>, vector<4x8x64xbf16>
    %2 = vector.shape_cast %1 : vector<4x8x64xbf16> to vector<32x64xbf16>
    %cst = arith.constant dense<0.000000e+00> : vector<32x128xf32>
    %3 = tpu.matmul %2, %0, %cst {dimension_numbers = #tpu.dot_dimension_numbers<[1], [0], [0], [1], [0, 0, 1, 1], [], []>} : vector<32x64xbf16>, vector<64x128xbf16>, vector<32x128xf32> -> vector<32x128xf32>
    %c0_4 = arith.constant 0 : index
    %c0_5 = arith.constant 0 : index
    %4 = vector.load %arg6[%c0_4, %c0_5] : memref<1x128xf32, #tpu.memory_space<vmem>>, vector<1x128xf32>
    %5 = vector.broadcast %4 : vector<1x128xf32> to vector<32x128xf32>
    %6 = arith.addf %3, %5 : vector<32x128xf32>
    %7 = math.tanh %6 : vector<32x128xf32>
    %8 = vector.shape_cast %7 : vector<32x128xf32> to vector<4x8x128xf32>
    %c0_6 = arith.constant 0 : index
    %c0_7 = arith.constant 0 : index
    %9 = vector.load %arg2[%c0_6, %c0_7] : memref<4x8xf32, #tpu.memory_space<vmem>>, vector<4x8xf32>
    %10 = vector.shape_cast %9 : vector<4x8xf32> to vector<4x8x1xf32>
    %11 = vector.broadcast %10 : vector<4x8x1xf32> to vector<4x8x128xf32>
    %12 = arith.mulf %8, %11 : vector<4x8x128xf32>
    %cst_8 = arith.constant dense<0.000000e+00> : vector<4x128xf32>
    %13 = vector.multi_reduction <add>, %12, %cst_8 [1] : vector<4x8x128xf32> to vector<4x128xf32>
    %c0_9 = arith.constant 0 : index
    %c0_10 = arith.constant 0 : index
    %14 = vector.load %arg2[%c0_9, %c0_10] : memref<4x8xf32, #tpu.memory_space<vmem>>, vector<4x8xf32>
    %cst_11 = arith.constant dense<0.000000e+00> : vector<4xf32>
    %15 = vector.multi_reduction <add>, %14, %cst_11 [1] : vector<4x8xf32> to vector<4xf32>
    %16 = vector.shape_cast %15 : vector<4xf32> to vector<4x1xf32>
    %cst_12 = arith.constant 9.99999971E-10 : f32
    %17 = vector.broadcast %cst_12 : f32 to vector<4x1xf32>
    %18 = arith.maximumf %16, %17 : vector<4x1xf32>
    %19 = tpu.reciprocal %18 {approx = true} : vector<4x1xf32> -> vector<4x1xf32>
    %20 = vector.broadcast %19 : vector<4x1xf32> to vector<4x128xf32>
    %21 = arith.mulf %13, %20 : vector<4x128xf32>
    %c0_13 = arith.constant 0 : index
    %c0_14 = arith.constant 0 : index
    %c0_15 = arith.constant 0 : index
    %22 = vector.load %arg3[%c0_13, %c0_14, %c0_15] : memref<1x8x64xbf16, #tpu.memory_space<vmem>>, vector<1x8x64xbf16>
    %23 = vector.shape_cast %22 : vector<1x8x64xbf16> to vector<8x64xbf16>
    %cst_16 = arith.constant dense<0.000000e+00> : vector<8x128xf32>
    %24 = tpu.matmul %23, %0, %cst_16 {dimension_numbers = #tpu.dot_dimension_numbers<[1], [0], [0], [1], [0, 0, 1, 1], [], []>} : vector<8x64xbf16>, vector<64x128xbf16>, vector<8x128xf32> -> vector<8x128xf32>
    %c0_17 = arith.constant 0 : index
    %c0_18 = arith.constant 0 : index
    %25 = vector.load %arg6[%c0_17, %c0_18] : memref<1x128xf32, #tpu.memory_space<vmem>>, vector<1x128xf32>
    %26 = vector.broadcast %25 : vector<1x128xf32> to vector<8x128xf32>
    %27 = arith.addf %24, %26 : vector<8x128xf32>
    %28 = math.tanh %27 : vector<8x128xf32>
    %c0_19 = arith.constant 0 : index
    %c0_20 = arith.constant 0 : index
    %29 = vector.load %arg4[%c0_19, %c0_20] : memref<1x8xf32, #tpu.memory_space<vmem>>, vector<1x8xf32>
    %30 = vector.shape_cast %29 : vector<1x8xf32> to vector<8x1xf32>
    %31 = vector.broadcast %30 : vector<8x1xf32> to vector<8x128xf32>
    %32 = arith.mulf %28, %31 : vector<8x128xf32>
    %cst_21 = arith.constant dense<0.000000e+00> : vector<128xf32>
    %33 = vector.multi_reduction <add>, %32, %cst_21 [0] : vector<8x128xf32> to vector<128xf32>
    %34 = vector.shape_cast %33 : vector<128xf32> to vector<1x128xf32>
    %c0_22 = arith.constant 0 : index
    %c0_23 = arith.constant 0 : index
    %35 = vector.load %arg4[%c0_22, %c0_23] : memref<1x8xf32, #tpu.memory_space<vmem>>, vector<1x8xf32>
    %cst_24 = arith.constant dense<0.000000e+00> : vector<1xf32>
    %36 = vector.multi_reduction <add>, %35, %cst_24 [1] : vector<1x8xf32> to vector<1xf32>
    %37 = vector.shape_cast %36 : vector<1xf32> to vector<1x1xf32>
    %cst_25 = arith.constant 9.99999971E-10 : f32
    %38 = vector.broadcast %cst_25 : f32 to vector<1x1xf32>
    %39 = arith.maximumf %37, %38 : vector<1x1xf32>
    %40 = tpu.reciprocal %39 {approx = true} : vector<1x1xf32> -> vector<1x1xf32>
    %41 = vector.broadcast %40 : vector<1x1xf32> to vector<1x128xf32>
    %42 = arith.mulf %34, %41 : vector<1x128xf32>
    %cst_26 = arith.constant dense<0.000000e+00> : vector<1x4xf32>
    %43 = tpu.matmul %42, %21, %cst_26 {dimension_numbers = #tpu.dot_dimension_numbers<[1], [1], [0], [0], [0, 0, 1, 0], [], []>} : vector<1x128xf32>, vector<4x128xf32>, vector<1x4xf32> -> vector<1x4xf32>
    %cst_27 = arith.constant 1.000000e+00 : f32
    %44 = vector.broadcast %cst_27 : f32 to vector<1x128xf32>
    %45 = arith.mulf %21, %21 : vector<4x128xf32>
    %cst_28 = arith.constant dense<0.000000e+00> : vector<1x4xf32>
    %46 = tpu.matmul %44, %45, %cst_28 {dimension_numbers = #tpu.dot_dimension_numbers<[1], [1], [0], [0], [0, 0, 1, 0], [], []>} : vector<1x128xf32>, vector<4x128xf32>, vector<1x4xf32> -> vector<1x4xf32>
    %47 = arith.mulf %42, %42 : vector<1x128xf32>
    %cst_29 = arith.constant dense<0.000000e+00> : vector<1xf32>
    %48 = vector.multi_reduction <add>, %47, %cst_29 [1] : vector<1x128xf32> to vector<1xf32>
    %49 = vector.shape_cast %48 : vector<1xf32> to vector<1x1xf32>
    %50 = vector.broadcast %49 : vector<1x1xf32> to vector<1x4xf32>
    %51 = arith.mulf %46, %50 : vector<1x4xf32>
    %52 = math.rsqrt %51 : vector<1x4xf32>
    %cst_30 = arith.constant 1.000000e+08 : f32
    %53 = vector.broadcast %cst_30 : f32 to vector<1x4xf32>
    %54 = arith.minimumf %52, %53 : vector<1x4xf32>
    %55 = arith.mulf %43, %54 : vector<1x4xf32>
    %c0_31 = arith.constant 0 : index
    %c0_32 = arith.constant 0 : index
    %56 = vector.load %arg7[%c0_31, %c0_32] : memref<1x4xf32, #tpu.memory_space<vmem>>, vector<1x4xf32>
    tpu.vector_store %arg7[%c0_31, %c0_32], %55 {strides = array<i32>} : memref<1x4xf32, #tpu.memory_space<vmem>>, vector<1x4xf32>,
    return
  }
  func.func @transform_0(%arg0: i32) -> (i32, i32, i32) {
    %c0_i32 = arith.constant 0 : i32
    %c0_i32_0 = arith.constant 0 : i32
    %c0_i32_1 = arith.constant 0 : i32
    return %arg0, %c0_i32, %c0_i32_0 : i32, i32, i32
  }
  func.func @transform_1(%arg0: i32) -> (i32, i32) {
    %c0_i32 = arith.constant 0 : i32
    %c0_i32_0 = arith.constant 0 : i32
    return %arg0, %c0_i32 : i32, i32
  }
  func.func @transform_2(%arg0: i32) -> (i32, i32, i32) {
    %c0_i32 = arith.constant 0 : i32
    %c0_i32_0 = arith.constant 0 : i32
    %c0_i32_1 = arith.constant 0 : i32
    %c0_i32_2 = arith.constant 0 : i32
    return %c0_i32, %c0_i32_0, %c0_i32_1 : i32, i32, i32
  }
  func.func @transform_3(%arg0: i32) -> (i32, i32) {
    %c0_i32 = arith.constant 0 : i32
    %c0_i32_0 = arith.constant 0 : i32
    %c0_i32_1 = arith.constant 0 : i32
    return %c0_i32, %c0_i32_0 : i32, i32
  }
  func.func @transform_4(%arg0: i32) -> (i32, i32) {
    %c0_i32 = arith.constant 0 : i32
    %c0_i32_0 = arith.constant 0 : i32
    %c0_i32_1 = arith.constant 0 : i32
    return %c0_i32, %c0_i32_0 : i32, i32
  }
  func.func @transform_5(%arg0: i32) -> (i32, i32) {
    %c0_i32 = arith.constant 0 : i32
    %c0_i32_0 = arith.constant 0 : i32
    %c0_i32_1 = arith.constant 0 : i32
    return %c0_i32, %c0_i32_0 : i32, i32
  }
  func.func @transform_6(%arg0: i32) -> (i32, i32) {
    %c0_i32 = arith.constant 0 : i32
    %c0_i32_0 = arith.constant 0 : i32
    return %c0_i32, %arg0 : i32, i32
  }
}

</mosaic_0001>

<llo_original>
// kernel: siamese_pallas.1
$region0: #{siamese_pallas.1}
  #allocation0 [shape = 'u32[]', space=smem, size = 0x4, offset = 0x4, fixed_abs, tag = 'smem constant byte address 0x4 - core index']
  #allocation1 [shape = 'u32[144,128]{1,0:T(1,128)}', space=vmem, size = 0x12000, scoped, tag = 'internal scratch']
  %s0 = inlined_call_operand.vmem [shape: bf16[4,8,64], index: 0, kind: input, shape index: {}]
  %s1 = inlined_call_operand.vmem [shape: f32[4,8], index: 1, kind: input, shape index: {}]
  %s2 = inlined_call_operand.vmem [shape: bf16[1,8,64], index: 2, kind: input, shape index: {}]
  %s3 = inlined_call_operand.vmem [shape: f32[1,8], index: 3, kind: input, shape index: {}]
  %s4 = inlined_call_operand.vmem [shape: bf16[64,128], index: 4, kind: input, shape index: {}]
  %s5 = inlined_call_operand.vmem [shape: f32[1,128], index: 5, kind: input, shape index: {}]
  %s6 = inlined_call_operand.hbm [shape: f32[1,4], index: 6, kind: output, shape index: {}]
  %s7 = sld [smem:[#allocation0]]
  $region34: #{siamese_pallas.1} parent=0
    _
  %s9 = ssub.s32 1, %s7
  %s10 = scalar_select 0, %s9, %s7
  $region1: #{siamese_pallas.1} parent=0
    #allocation2 [shape = 'u8[512]{0}', space=vmem, size = 0x400, scoped, tag = 'output window, operand 0, single buffered']
    #allocation3 [shape = 's32[1]{0}', space=sflag, size = 0x4, scoped, tag = 'scoped memory for siamese_pallas.1']
    %11 = vsyncpa [#allocation3], 0
    // Predicated region
    $region2: #{siamese_pallas.1} parent=1 // pred_check
      _
    $region3: #{siamese_pallas.1} parent=1 // pred_check_branch
      %13 = sbr.rel (0) target = $region5
    $region4: #{siamese_pallas.1} parent=1 // pred_region
      _
    $region5: #{siamese_pallas.1} parent=1 // pred_fallthru
      _
    // Predicated region
    $region6: #{siamese_pallas.1} parent=1 // pred_check
      _
    $region7: #{siamese_pallas.1} parent=1 // pred_check_branch
      %15 = sbr.rel (0) target = $region9
    $region8: #{siamese_pallas.1} parent=1 // pred_region
      _
    $region9: #{siamese_pallas.1} parent=1 // pred_fallthru
      _
    // Predicated region
    $region10: #{siamese_pallas.1} parent=1 // pred_check
      _
    $region11: #{siamese_pallas.1} parent=1 // pred_check_branch
      %17 = sbr.rel (0) target = $region13
    $region12: #{siamese_pallas.1} parent=1 // pred_region
      _
    $region13: #{siamese_pallas.1} parent=1 // pred_fallthru
      _
    // Predicated region
    $region14: #{siamese_pallas.1} parent=1 // pred_check
      _
    $region15: #{siamese_pallas.1} parent=1 // pred_check_branch
      %19 = sbr.rel (0) target = $region17
    $region16: #{siamese_pallas.1} parent=1 // pred_region
      _
    $region17: #{siamese_pallas.1} parent=1 // pred_fallthru
      _
    // Predicated region
    $region18: #{siamese_pallas.1} parent=1 // pred_check
      _
    $region19: #{siamese_pallas.1} parent=1 // pred_check_branch
      %21 = sbr.rel (0) target = $region21
    $region20: #{siamese_pallas.1} parent=1 // pred_region
      _
    $region21: #{siamese_pallas.1} parent=1 // pred_fallthru
      _
    // Predicated region
    $region22: #{siamese_pallas.1} parent=1 // pred_check
      _
    $region23: #{siamese_pallas.1} parent=1 // pred_check_branch
      %23 = sbr.rel (0) target = $region25
    $region24: #{siamese_pallas.1} parent=1 // pred_region
      _
    $region25: #{siamese_pallas.1} parent=1 // pred_fallthru
      _
    %v25 = vld [vmem:[%s4] sm:$0xf]
    %v26 = vld [vmem:[%s4 + $0x4] sm:$0xf]
    %v27 = vld [vmem:[%s4 + $0x8] sm:$0xf]
    %v28 = vld [vmem:[%s4 + $0xc] sm:$0xf]
    %v29 = vld [vmem:[%s4 + $0x10] sm:$0xf]
    %v30 = vld [vmem:[%s4 + $0x14] sm:$0xf]
    %v31 = vld [vmem:[%s4 + $0x18] sm:$0xf]
    %v32 = vld [vmem:[%s4 + $0x1c] sm:$0xf]
    %v33 = vld [vmem:[%s0] sm:$0xf]
    %v34 = vld [vmem:[%s0 + $0x4] sm:$0xf]
    %v35 = vld [vmem:[%s0 + $0x8] sm:$0xf]
    %v36 = vld [vmem:[%s0 + $0xc] sm:$0xf]
    %v37 = vld [vmem:[%s5] sm:$0x1]
    %v39 = vlaneseq
    %v40 = vshrl.u32 %v39, 7
    %v41 = vsub.s32 0, %v40
    %v42 = vrot.slane %v37, %v41
    %v48 = vunpack.c.l.b16 %v33
    %v49 = vunpack.c.l.b16 %v34
    %v50 = vunpack.c.l.b16 %v35
    %v51 = vunpack.c.l.b16 %v36
    %v52 = vpack.c.b16 %v49, %v48
    %v53 = vpack.c.b16 %v51, %v50
    %v62 = vunpack.c.l.b16 %v25
    %v63 = vunpack.c.l.b16 %v26
    %v64 = vunpack.c.l.b16 %v27
    %v65 = vunpack.c.l.b16 %v28
    %v66 = vunpack.c.l.b16 %v29
    %v67 = vunpack.c.l.b16 %v30
    %v68 = vunpack.c.l.b16 %v31
    %v69 = vunpack.c.l.b16 %v32
    %v70 = vpack.c.b16 %v63, %v62
    %v71 = vpack.c.b16 %v65, %v64
    %v72 = vpack.c.b16 %v67, %v66
    %v73 = vpack.c.b16 %v69, %v68
    %vm78 = vcmask 523264
    %v80 = vsel %vm78, %v52, 0
    %v83 = vsel %vm78, %v53, 0
    %85 = vmatprep.subr.bf16.mxu0 0
    %86 = vmatpush1.bf16.msra.mxu0 %v70
    %87 = vmatprep.subr.bf16.mxu0 0
    %88 = vmatpush1.bf16.msra.mxu0 %v71
    %89 = vmatprep.subr.bf16.mxu0 0
    %90 = vmatpush1.bf16.msra.mxu0 %v72
    %91 = vmatprep.subr.bf16.mxu0 0
    %92 = vmatpush1.bf16.msra.mxu0 %v73
    %93 = vmatprep.subr.bf16.mxu0 0
    %94 = vmatpush1.bf16.msra.mxu0 0
    %95 = vmatprep.subr.bf16.mxu0 0
    %96 = vmatpush1.bf16.msra.mxu0 0
    %97 = vmatprep.subr.bf16.mxu0 0
    %98 = vmatpush1.bf16.msra.mxu0 0
    %99 = vmatprep.subr.bf16.mxu0 0
    %100 = vmatpush1.bf16.msra.mxu0 0
    %101 = vmatprep.subr.bf16.mxu0 0
    %102 = vmatpush1.bf16.msra.mxu0 0
    %103 = vmatprep.subr.bf16.mxu0 0
    %104 = vmatpush1.bf16.msra.mxu0 0
    %105 = vmatprep.subr.bf16.mxu0 0
    %106 = vmatpush1.bf16.msra.mxu0 0
    %107 = vmatprep.subr.bf16.mxu0 0
    %108 = vmatpush1.bf16.msra.mxu0 0
    %109 = vmatprep.subr.bf16.mxu0 0
    %110 = vmatpush1.bf16.msra.mxu0 0
    %111 = vmatprep.subr.bf16.mxu0 0
    %112 = vmatpush1.bf16.msra.mxu0 0
    %113 = vmatprep.subr.bf16.mxu0 0
    %114 = vmatpush1.bf16.msra.mxu0 0
    %115 = vmatprep.subr.bf16.mxu0 0
    %116 = vmatpush1.bf16.msra.mxu0 0
    %117 = vmatprep.mubr.bf16.mxu0 0
    %118 = vmatmul.mubr.bf16.gmra.mrb[0].mxu0 %v80
    %v119 = vpop.f32.mrb[0].mxu0
    %v120 = vadd.f32 %v42, %v119
    %v121 = vpop.f32.mrb[0].mxu0
    %v122 = vpop.f32.mrb[0].mxu0
    %v123 = vadd.f32 %v42, %v122
    %v124 = vpop.f32.mrb[0].mxu0
    %125 = vmatprep.mubr.bf16.mxu0 0
    %126 = vmatmul.mubr.bf16.gmra.mrb[0].mxu0 %v83
    %v127 = vpop.f32.mrb[0].mxu0
    %v128 = vadd.f32 %v42, %v127
    %v129 = vpop.f32.mrb[0].mxu0
    %v130 = vpop.f32.mrb[0].mxu0
    %v131 = vadd.f32 %v42, %v130
    %v132 = vpop.f32.mrb[0].mxu0
    %133 = vdwg.mxu0
    %v134 = vtanh.pop %v120
    %v135 = vtanh.pop %v123
    %v136 = vtanh.pop %v128
    %v137 = vtanh.pop %v131
    %v138 = vld [vmem:[%s1] sm:$0xf]
    %v139 = vlaneseq
    %v140 = vshrl.u32 %v139, 7
    %v141 = vsub.s32 0, %v140
    %v142 = vrot.slane %v138, %v141
    %144 = vbcast.lane.b32.xlu0 %v142, 256
    %v145 = vpop.permute.xlu0 %144
    %v146 = vlaneseq
    %v147 = vshrl.u32 %v146, 7
    %v148 = vsub.s32 1, %v147
    %v149 = vrot.slane %v138, %v148
    %151 = vbcast.lane.b32.xlu0 %v149, 256
    %v152 = vpop.permute.xlu0 %151
    %v153 = vlaneseq
    %v154 = vshrl.u32 %v153, 7
    %v155 = vsub.s32 2, %v154
    %v156 = vrot.slane %v138, %v155
    %158 = vbcast.lane.b32.xlu0 %v156, 256
    %v159 = vpop.permute.xlu0 %158
    %v160 = vlaneseq
    %v161 = vshrl.u32 %v160, 7
    %v162 = vsub.s32 3, %v161
    %v163 = vrot.slane %v138, %v162
    %165 = vbcast.lane.b32.xlu0 %v163, 256
    %v166 = vpop.permute.xlu0 %165
    %v167 = vmul.f32 %v134, %v145
    %v168 = vmul.f32 %v135, %v152
    %v169 = vmul.f32 %v136, %v159
    %v170 = vmul.f32 %v137, %v166
    %v171 = vrot.slane %v167, 4
    %v172 = vadd.f32 %v167, %v171
    %v173 = vrot.slane %v172, 2
    %v174 = vadd.f32 %v172, %v173
    %v175 = vrot.slane %v174, 1
    %v176 = vadd.f32 %v174, %v175
    %v177 = vrot.slane %v168, 4
    %v178 = vadd.f32 %v168, %v177
    %v179 = vrot.slane %v178, 2
    %v180 = vadd.f32 %v178, %v179
    %v181 = vrot.slane %v180, 1
    %v182 = vadd.f32 %v180, %v181
    %v183 = vrot.slane %v169, 4
    %v184 = vadd.f32 %v169, %v183
    %v185 = vrot.slane %v184, 2
    %v186 = vadd.f32 %v184, %v185
    %v187 = vrot.slane %v186, 1
    %v188 = vadd.f32 %v186, %v187
    %v189 = vrot.slane %v170, 4
    %v190 = vadd.f32 %v170, %v189
    %v191 = vrot.slane %v190, 2
    %v192 = vadd.f32 %v190, %v191
    %v193 = vrot.slane %v192, 1
    %v194 = vadd.f32 %v192, %v193
    %vm195 = vcmask 60416
    %v196 = vsel %vm195, %v138, 0.0
    %197 = vadd.xlane.f32.xlu0 %v196
    %v198 = vpop.xlane.xlu0 %197
    %v199 = vmax.f32 %v198, 1e-09
    %v200 = vrcp.pop %v199
    %v202 = vrot.slane %v200, 1
    %v203 = vrot.slane %v200, 2
    %v204 = vrot.slane %v200, 3
    %v209 = vmul.f32 %v176, %v200
    %v210 = vmul.f32 %v182, %v202
    %v211 = vmul.f32 %v188, %v203
    %v212 = vmul.f32 %v194, %v204
    %v213 = vld [vmem:[%s2] sm:$0xf]
    %v215 = vsel %vm78, %v213, 0
    %217 = vmatprep.subr.bf16.mxu0 0
    %218 = vmatpush1.bf16.msra.mxu0 %v70
    %219 = vmatprep.subr.bf16.mxu0 0
    %220 = vmatpush1.bf16.msra.mxu0 %v71
    %221 = vmatprep.subr.bf16.mxu0 0
    %222 = vmatpush1.bf16.msra.mxu0 %v72
    %223 = vmatprep.subr.bf16.mxu0 0
    %224 = vmatpush1.bf16.msra.mxu0 %v73
    %225 = vmatprep.subr.bf16.mxu0 0
    %226 = vmatpush1.bf16.msra.mxu0 0
    %227 = vmatprep.subr.bf16.mxu0 0
    %228 = vmatpush1.bf16.msra.mxu0 0
    %229 = vmatprep.subr.bf16.mxu0 0
    %230 = vmatpush1.bf16.msra.mxu0 0
    %231 = vmatprep.subr.bf16.mxu0 0
    %232 = vmatpush1.bf16.msra.mxu0 0
    %233 = vmatprep.subr.bf16.mxu0 0
    %234 = vmatpush1.bf16.msra.mxu0 0
    %235 = vmatprep.subr.bf16.mxu0 0
    %236 = vmatpush1.bf16.msra.mxu0 0
    %237 = vmatprep.subr.bf16.mxu0 0
    %238 = vmatpush1.bf16.msra.mxu0 0
    %239 = vmatprep.subr.bf16.mxu0 0
    %240 = vmatpush1.bf16.msra.mxu0 0
    %241 = vmatprep.subr.bf16.mxu0 0
    %242 = vmatpush1.bf16.msra.mxu0 0
    %243 = vmatprep.subr.bf16.mxu0 0
    %244 = vmatpush1.bf16.msra.mxu0 0
    %245 = vmatprep.subr.bf16.mxu0 0
    %246 = vmatpush1.bf16.msra.mxu0 0
    %247 = vmatprep.subr.bf16.mxu0 0
    %248 = vmatpush1.bf16.msra.mxu0 0
    %249 = vmatprep.mubr.bf16.mxu0 0
    %250 = vmatmul.mubr.bf16.gmra.mrb[0].mxu0 %v215
    %v251 = vpop.f32.mrb[0].mxu0
    %v252 = vadd.f32 %v42, %v251
    %v253 = vpop.f32.mrb[0].mxu0
    %v254 = vpop.f32.mrb[0].mxu0
    %v255 = vpop.f32.mrb[0].mxu0
    %256 = vdwg.mxu0
    %v257 = vtanh.pop %v252
    %v258 = vld [vmem:[%s3] sm:$0x1]
    %v259 = vlaneseq
    %v260 = vshrl.u32 %v259, 7
    %v261 = vsub.s32 0, %v260
    %v262 = vrot.slane %v258, %v261
    %264 = vbcast.lane.b32.xlu0 %v262, 256
    %v265 = vpop.permute.xlu0 %264
    %v266 = vmul.f32 %v257, %v265
    %v267 = vrot.slane %v266, 4
    %v268 = vadd.f32 %v266, %v267
    %v269 = vrot.slane %v268, 2
    %v270 = vadd.f32 %v268, %v269
    %v271 = vrot.slane %v270, 1
    %v272 = vadd.f32 %v270, %v271
    %vm273 = vcmask 57344
    %v274 = vsel %vm273, %v258, 0.0
    %275 = vadd.xlane.f32.xlu0 %v274
    %v276 = vpop.xlane.xlu0 %275
    %v277 = vmax.f32 %v276, 1e-09
    %v278 = vrcp.pop %v277
    %v279 = vmul.f32 %v272, %v278
    %v284 = vrot.slane %v210, 7
    %vm285 = vcmask 1041409
    %v286 = vsel %vm285, %v284, %v209
    %v287 = vrot.slane %v211, 6
    %vm288 = vcmask 1042434
    %v289 = vsel %vm288, %v287, %v286
    %v290 = vrot.slane %v212, 5
    %vm291 = vcmask 1043459
    %v292 = vsel %vm291, %v290, %v289
    %294 = vmatprep.subr.mxu0 0.0
    %295 = vmatpush1.xpose.msra.mxu0 %v292
    %296 = vmatprep.subr.mxu0 0.0
    %297 = vmatpush1.xpose.msra.mxu0 0.0
    %298 = vmatprep.subr.mxu0 0.0
    %299 = vmatpush1.xpose.msra.mxu0 0.0
    %300 = vmatprep.subr.mxu0 0.0
    %301 = vmatpush1.xpose.msra.mxu0 0.0
    %302 = vmatprep.subr.mxu0 0.0
    %303 = vmatpush1.xpose.msra.mxu0 0.0
    %304 = vmatprep.subr.mxu0 0.0
    %305 = vmatpush1.xpose.msra.mxu0 0.0
    %306 = vmatprep.subr.mxu0 0.0
    %307 = vmatpush1.xpose.msra.mxu0 0.0
    %308 = vmatprep.subr.mxu0 0.0
    %309 = vmatpush1.xpose.msra.mxu0 0.0
    %310 = vmatprep.subr.mxu0 0.0
    %311 = vmatpush1.xpose.msra.mxu0 0.0
    %312 = vmatprep.subr.mxu0 0.0
    %313 = vmatpush1.xpose.msra.mxu0 0.0
    %314 = vmatprep.subr.mxu0 0.0
    %315 = vmatpush1.xpose.msra.mxu0 0.0
    %316 = vmatprep.subr.mxu0 0.0
    %317 = vmatpush1.xpose.msra.mxu0 0.0
    %318 = vmatprep.subr.mxu0 0.0
    %319 = vmatpush1.xpose.msra.mxu0 0.0
    %320 = vmatprep.subr.mxu0 0.0
    %321 = vmatpush1.xpose.msra.mxu0 0.0
    %322 = vmatprep.subr.mxu0 0.0
    %323 = vmatpush1.xpose.msra.mxu0 0.0
    %324 = vmatprep.subr.mxu0 0.0
    %325 = vmatpush1.xpose.msra.mxu0 0.0
    %326 = vmatprep.subr.mxu0 0.0
    %327 = vmatpush1.xpose.msra.mxu0 0.0
    %328 = vmatprep.subr.mxu0 0.0
    %329 = vmatpush1.xpose.msra.mxu0 0.0
    %330 = vmatprep.subr.mxu0 0.0
    %331 = vmatpush1.xpose.msra.mxu0 0.0
    %332 = vmatprep.subr.mxu0 0.0
    %333 = vmatpush1.xpose.msra.mxu0 0.0
    %334 = vmatprep.subr.mxu0 0.0
    %335 = vmatpush1.xpose.msra.mxu0 0.0
    %336 = vmatprep.subr.mxu0 0.0
    %337 = vmatpush1.xpose.msra.mxu0 0.0
    %338 = vmatprep.subr.mxu0 0.0
    %339 = vmatpush1.xpose.msra.mxu0 0.0
    %340 = vmatprep.subr.mxu0 0.0
    %341 = vmatpush1.xpose.msra.mxu0 0.0
    %342 = vmatprep.subr.mxu0 0.0
    %343 = vmatpush1.xpose.msra.mxu0 0.0
    %344 = vmatprep.subr.mxu0 0.0
    %345 = vmatpush1.xpose.msra.mxu0 0.0
    %346 = vmatprep.subr.mxu0 0.0
    %347 = vmatpush1.xpose.msra.mxu0 0.0
    %348 = vmatprep.subr.mxu0 0.0
    %349 = vmatpush1.xpose.msra.mxu0 0.0
    %350 = vmatprep.subr.mxu0 0.0
    %351 = vmatpush1.xpose.msra.mxu0 0.0
    %352 = vmatprep.subr.mxu0 0.0
    %353 = vmatpush1.xpose.msra.mxu0 0.0
    %354 = vmatprep.subr.mxu0 0.0
    %355 = vmatpush1.xpose.msra.mxu0 0.0
    %356 = vmatprep.subr.mxu0 0.0
    %357 = vmatpush1.xpose.msra.mxu0 0.0
    %358 = vmatprep.mubr.f32.mxu0 0.0
    %359 = vmatmul.mubr.f32.gmra.mrb[0].mxu0 %v279
    %v360 = vpop.f32.mrb[0].mxu0
    %v361 = vadd.f32 0.0, %v360
    %v362 = vpop.f32.mrb[0].mxu0
    %363 = vdwg.mxu0
    %v364 = vmul.f32 %v209, %v209
    %v365 = vmul.f32 %v210, %v210
    %v366 = vmul.f32 %v211, %v211
    %v367 = vmul.f32 %v212, %v212
    %v372 = vrot.slane %v365, 7
    %v373 = vsel %vm285, %v372, %v364
    %v374 = vrot.slane %v366, 6
    %v375 = vsel %vm288, %v374, %v373
    %v376 = vrot.slane %v367, 5
    %v377 = vsel %vm291, %v376, %v375
    %379 = vmatprep.subr.mxu0 0.0
    %380 = vmatpush1.xpose.msra.mxu0 %v377
    %381 = vmatprep.subr.mxu0 0.0
    %382 = vmatpush1.xpose.msra.mxu0 0.0
    %383 = vmatprep.subr.mxu0 0.0
    %384 = vmatpush1.xpose.msra.mxu0 0.0
    %385 = vmatprep.subr.mxu0 0.0
    %386 = vmatpush1.xpose.msra.mxu0 0.0
    %387 = vmatprep.subr.mxu0 0.0
    %388 = vmatpush1.xpose.msra.mxu0 0.0
    %389 = vmatprep.subr.mxu0 0.0
    %390 = vmatpush1.xpose.msra.mxu0 0.0
    %391 = vmatprep.subr.mxu0 0.0
    %392 = vmatpush1.xpose.msra.mxu0 0.0
    %393 = vmatprep.subr.mxu0 0.0
    %394 = vmatpush1.xpose.msra.mxu0 0.0
    %395 = vmatprep.subr.mxu0 0.0
    %396 = vmatpush1.xpose.msra.mxu0 0.0
    %397 = vmatprep.subr.mxu0 0.0
    %398 = vmatpush1.xpose.msra.mxu0 0.0
    %399 = vmatprep.subr.mxu0 0.0
    %400 = vmatpush1.xpose.msra.mxu0 0.0
    %401 = vmatprep.subr.mxu0 0.0
    %402 = vmatpush1.xpose.msra.mxu0 0.0
    %403 = vmatprep.subr.mxu0 0.0
    %404 = vmatpush1.xpose.msra.mxu0 0.0
    %405 = vmatprep.subr.mxu0 0.0
    %406 = vmatpush1.xpose.msra.mxu0 0.0
    %407 = vmatprep.subr.mxu0 0.0
    %408 = vmatpush1.xpose.msra.mxu0 0.0
    %409 = vmatprep.subr.mxu0 0.0
    %410 = vmatpush1.xpose.msra.mxu0 0.0
    %411 = vmatprep.subr.mxu0 0.0
    %412 = vmatpush1.xpose.msra.mxu0 0.0
    %413 = vmatprep.subr.mxu0 0.0
    %414 = vmatpush1.xpose.msra.mxu0 0.0
    %415 = vmatprep.subr.mxu0 0.0
    %416 = vmatpush1.xpose.msra.mxu0 0.0
    %417 = vmatprep.subr.mxu0 0.0
    %418 = vmatpush1.xpose.msra.mxu0 0.0
    %419 = vmatprep.subr.mxu0 0.0
    %420 = vmatpush1.xpose.msra.mxu0 0.0
    %421 = vmatprep.subr.mxu0 0.0
    %422 = vmatpush1.xpose.msra.mxu0 0.0
    %423 = vmatprep.subr.mxu0 0.0
    %424 = vmatpush1.xpose.msra.mxu0 0.0
    %425 = vmatprep.subr.mxu0 0.0
    %426 = vmatpush1.xpose.msra.mxu0 0.0
    %427 = vmatprep.subr.mxu0 0.0
    %428 = vmatpush1.xpose.msra.mxu0 0.0
    %429 = vmatprep.subr.mxu0 0.0
    %430 = vmatpush1.xpose.msra.mxu0 0.0
    %431 = vmatprep.subr.mxu0 0.0
    %432 = vmatpush1.xpose.msra.mxu0 0.0
    %433 = vmatprep.subr.mxu0 0.0
    %434 = vmatpush1.xpose.msra.mxu0 0.0
    %435 = vmatprep.subr.mxu0 0.0
    %436 = vmatpush1.xpose.msra.mxu0 0.0
    %437 = vmatprep.subr.mxu0 0.0
    %438 = vmatpush1.xpose.msra.mxu0 0.0
    %439 = vmatprep.subr.mxu0 0.0
    %440 = vmatpush1.xpose.msra.mxu0 0.0
    %441 = vmatprep.subr.mxu0 0.0
    %442 = vmatpush1.xpose.msra.mxu0 0.0
    %443 = vmatprep.mubr.f32.mxu0 0.0
    %444 = vmatmul.mubr.f32.gmra.mrb[0].mxu0 1.0
    %v445 = vpop.f32.mrb[0].mxu0
    %v446 = vadd.f32 0.0, %v445
    %v447 = vpop.f32.mrb[0].mxu0
    %448 = vdwg.mxu0
    %v449 = vmul.f32 %v279, %v279
    %vm450 = vcmask 1040384
    %v451 = vsel %vm450, %v449, 0.0
    %452 = vadd.xlane.f32.xlu0 %v451
    %v453 = vpop.xlane.xlu0 %452
    %v454 = vmul.f32 %v446, %v453
    %v455 = vrsqrt.pop %v454
    %v456 = vmin.f32 %v455, 1e+08
    %v457 = vmul.f32 %v361, %v456
    %vm458 = vcmask 24576
    %459 = vst.msk [vmem:[#allocation2] sm:$0x1] %vm458, %v457
    // Predicated region
    $region26: #{siamese_pallas.1} parent=1 // pred_check
      _
    $region27: #{siamese_pallas.1} parent=1 // pred_check_branch
      %461 = sbr.rel (0) target = $region29
    $region28: #{siamese_pallas.1} parent=1 // pred_region
      %s463 = ssub.s32 16, 16
      %464 = vsyncadd [#allocation3], %s463
      %s466 = sshll.u32 [#allocation2], 4
      %s467 = int_to_ptr.vmem [resolvable:$true] %s466
      %469 = dma.vmem_to_hbm [thread:$0]  %s467, 16, %s6, [#allocation3]
    $region29: #{siamese_pallas.1} parent=1 // pred_fallthru
      _
    // Predicated region
    $region30: #{siamese_pallas.1} parent=1 // pred_check
      _
    $region31: #{siamese_pallas.1} parent=1 // pred_check_branch
      %471 = sbr.rel (0) target = $region33
    $region32: #{siamese_pallas.1} parent=1 // pred_region
      %472 = dma.done [#allocation3], 16
    $region33: #{siamese_pallas.1} parent=1 // pred_fallthru
      _
    %473 = vsyncpa [#allocation3], 1

</llo_original>
